<compile_context>
chip_gen: v7x
topology: tpu7x:2x2x1
jax: 0.10.0
libtpu: 0.0.40
codegen_flags: <defaults>
</compile_context>

<pallas_src>
import functools

import jax
import jax.numpy as jnp
from jax import lax
from jax.experimental import pallas as pl
from jax.experimental.pallas import tpu as pltpu


LANES = 128           # lane width of each row (MXU-friendly on v5e/v6e/v7x)
TB = 8                # sublane rows per scan step -> (8, 128) dense tiles
CHUNK = TB * LANES    # elements consumed per fori_loop iteration
PAD_SCORE = -1e30     # exp(PAD - m) underflows to 0: pads never perturb the scan


def _cox_loss_kernel(s_ref, e_ref, out_ref, *, num_chunks, inv_n):
    # Triangular constants, built once in-kernel (grid has a single step).
    # tri[j, k] = 1 iff j <= k  -> within-row inclusive prefix sum via MXU.
    lj = lax.broadcasted_iota(jnp.int32, (LANES, LANES), 0)
    lk = lax.broadcasted_iota(jnp.int32, (LANES, LANES), 1)
    tri = (lj <= lk).astype(jnp.float32)                   # (128, 128)

    # strict_tri[r, r'] = 1 iff r' < r -> cross-row exclusive prefix in a chunk.
    rr = lax.broadcasted_iota(jnp.int32, (TB, TB), 0)
    rp = lax.broadcasted_iota(jnp.int32, (TB, TB), 1)
    strict_tri = (rp < rr).astype(jnp.float32)             # (TB, TB)

    def body(c, carry):
        m_prev, l_prev, acc = carry                        # each (1, 1), vreg-resident
        r0 = pl.multiple_of(c * TB, TB)
        s = s_ref[pl.ds(r0, TB), :]                        # (TB, 128) sorted scores
        e = e_ref[pl.ds(r0, TB), :]                        # (TB, 128) event indicators

        chunk_max = jnp.max(jnp.max(s, axis=1, keepdims=True), axis=0, keepdims=True)
        m_new = jnp.maximum(m_prev, chunk_max)             # (1, 1) running max
        alpha = jnp.exp(m_prev - m_new)                    # rescale old running sum
        carried = l_prev * alpha                           # (1, 1) prev-chunk contribution

        ex = jnp.exp(s - m_new)                            # (TB, 128), all <= 1
        # Inclusive prefix sum within each row (MXU): within[r,k] = sum_{j<=k} ex[r,j]
        within = jnp.dot(ex, tri, preferred_element_type=jnp.float32)        # (TB, 128)
        # Per-lane sums of earlier rows in the chunk (MXU), then reduce lanes:
        below = jnp.dot(strict_tri, ex, preferred_element_type=jnp.float32)  # (TB, 128)
        excl_rows = jnp.sum(below, axis=1, keepdims=True)                     # (TB, 1)

        prefix = within + excl_rows + carried              # inclusive prefix over all i
        lse = m_new + jnp.log(prefix)                      # prefix-logsumexp of s
        loss = lse - s                                     # = logsumexp_{j<=i}(s[j]-s[i])
        w = jnp.sum(jnp.sum(e * loss, axis=1, keepdims=True), axis=0, keepdims=True)

        chunk_tot = jnp.sum(jnp.sum(ex, axis=1, keepdims=True), axis=0, keepdims=True)
        return (m_new, carried + chunk_tot, acc + w)

    init = (jnp.full((1, 1), PAD_SCORE, jnp.float32),      # running max
            jnp.zeros((1, 1), jnp.float32),                # running sumexp
            jnp.zeros((1, 1), jnp.float32))                # weighted-loss accumulator
    _, _, acc = lax.fori_loop(0, num_chunks, body, init,
                              unroll=min(num_chunks, 8))
    out_ref[...] = acc * inv_n


def cox_loss(scores, truth):
    """scores: (n, 1) float; truth: (n, 2) with E=truth[:,0], T=truth[:,1].

    Returns a scalar (0-d) float32 — the mean Cox loss.
    """
    s = jnp.squeeze(scores, axis=1).astype(jnp.float32)
    events = truth[:, 0].astype(jnp.float32)
    times = truth[:, 1].astype(jnp.float32)

    n = s.shape[0]
    # Stable sort by descending time (matches Python's stable `sorted` with key=-T).
    order = jnp.argsort(-times, stable=True)
    s_sorted = s[order]
    e_sorted = events[order]

    # Pad the sorted axis to a whole number of (TB, 128) chunks. Padding is
    # appended AFTER all real samples (invariant required by the scan); padded
    # scores use a large-negative constant so exp(pad - m) == 0, and padded
    # events are 0 so they never contribute to the weighted sum.
    n_pad = ((n + CHUNK - 1) // CHUNK) * CHUNK
    pad = n_pad - n
    if pad:
        s_sorted = jnp.concatenate(
            [s_sorted, jnp.full((pad,), PAD_SCORE, dtype=jnp.float32)])
        e_sorted = jnp.concatenate(
            [e_sorted, jnp.zeros((pad,), dtype=jnp.float32)])

    rows = n_pad // LANES
    s_mat = s_sorted.reshape(rows, LANES)   # row-major: flattened order == sorted order
    e_mat = e_sorted.reshape(rows, LANES)
    num_chunks = rows // TB

    kernel = functools.partial(_cox_loss_kernel,
                               num_chunks=num_chunks, inv_n=1.0 / float(n))
    out = pl.pallas_call(
        kernel,
        out_shape=jax.ShapeDtypeStruct((1, 1), jnp.float32),
        grid_spec=pltpu.PrefetchScalarGridSpec(
            num_scalar_prefetch=0,
            grid=(1,),
            in_specs=[
                pl.BlockSpec((rows, LANES), lambda t: (0, 0)),
                pl.BlockSpec((rows, LANES), lambda t: (0, 0)),
            ],
            out_specs=pl.BlockSpec((1, 1), lambda t: (0, 0)),
        ),
        compiler_params=pltpu.CompilerParams(
            dimension_semantics=("arbitrary",),
        ),
    )(s_mat, e_mat)
    return out[0, 0]


def _cox_loss_ref(scores, truth):
    """Pure-JAX reference mirroring the PyTorch loop exactly."""
    s = jnp.squeeze(scores, axis=1).astype(jnp.float32)
    events = truth[:, 0].astype(jnp.float32)
    times = truth[:, 1].astype(jnp.float32)
    order = jnp.argsort(-times, stable=True)
    s = s[order]
    e = events[order]
    n = s.shape[0]
    mask = jnp.tril(jnp.ones((n, n), dtype=bool))
    A = s[None, :] - s[:, None]
    A_masked = jnp.where(mask, A, -jnp.inf)
    m = jnp.max(A_masked, axis=1)
    lse = m + jnp.log(jnp.sum(jnp.where(mask, jnp.exp(A_masked - m[:, None]), 0.0),
                              axis=1))
    return jnp.mean(e * lse)


def _make_inputs(key, n_samples):
    k_scores, k_events, k_times = jax.random.split(key, 3)
    scores = jax.random.normal(k_scores, (n_samples, 1), dtype=jnp.float32)
    events = jax.random.bernoulli(k_events, p=0.6, shape=(n_samples,)).astype(jnp.float32)
    times = jax.random.uniform(k_times, (n_samples,), dtype=jnp.float32,
                               minval=0.1, maxval=10.0)
    truth = jnp.stack([events, times], axis=1)  # (n, 2): [E, T]
    return scores, truth


if __name__ == "__main__":
    # Primary small case (matches the module's typical (n_samples, 1)/(n_samples, 2)).
    scores, truth = _make_inputs(jax.random.PRNGKey(0), 8)
    out = jax.block_until_ready(cox_loss(scores, truth))
    ref = jax.block_until_ready(_cox_loss_ref(scores, truth))
    assert jnp.allclose(out, ref, rtol=1e-5, atol=1e-5), (out, ref)

    # Secondary case: exercises lane padding inside a single chunk.
    scores2, truth2 = _make_inputs(jax.random.PRNGKey(1), 300)
    out2 = jax.block_until_ready(cox_loss(scores2, truth2))
    ref2 = jax.block_until_ready(_cox_loss_ref(scores2, truth2))
    assert jnp.allclose(out2, ref2, rtol=1e-5, atol=1e-5), (out2, ref2)

    # Tertiary case: multiple (8,128) chunks -> exercises the cross-chunk carry.
    scores3, truth3 = _make_inputs(jax.random.PRNGKey(2), 2500)
    out3 = jax.block_until_ready(cox_loss(scores3, truth3))
    ref3 = jax.block_until_ready(_cox_loss_ref(scores3, truth3))
    assert jnp.allclose(out3, ref3, rtol=1e-4, atol=1e-5), (out3, ref3)

    print("KERNEL_OK")
</pallas_src>

<mosaic_0001>
module attributes {stable_mosaic.version = 11 : i64} {
  func.func @_cox_loss_kernel(%arg0: i32, %arg1: memref<8x128xf32, #tpu.memory_space<vmem>>, %arg2: memref<8x128xf32, #tpu.memory_space<vmem>>, %arg3: memref<1x1xf32, #tpu.memory_space<vmem>>) attributes {dimension_semantics = [#tpu.dimension_semantics<arbitrary>], iteration_bounds = array<i64: 1>, scalar_prefetch = 0 : i64, scratch_operands = 0 : i64, tpu.core_type = #tpu.core_type<tc>, window_params = [{pipeline_mode = #tpu.pipeline_mode<synchronous>, transform_indices = @transform_0, window_bounds = array<i64: 8, 128>}, {pipeline_mode = #tpu.pipeline_mode<synchronous>, transform_indices = @transform_1, window_bounds = array<i64: 8, 128>}, {pipeline_mode = #tpu.pipeline_mode<synchronous>, transform_indices = @transform_2, window_bounds = array<i64: 1, 1>}]} {
    %0 = tpu.iota {dimensions = array<i32: 0>} : vector<128x128xi32>
    %1 = tpu.iota {dimensions = array<i32: 1>} : vector<128x128xi32>
    %2 = arith.cmpi sle, %0, %1 : vector<128x128xi32>
    %3 = arith.extui %2 : vector<128x128xi1> to vector<128x128xi32>
    %4 = arith.sitofp %3 : vector<128x128xi32> to vector<128x128xf32>
    %5 = tpu.iota {dimensions = array<i32: 0>} : vector<8x8xi32>
    %6 = tpu.iota {dimensions = array<i32: 1>} : vector<8x8xi32>
    %7 = arith.cmpi slt, %6, %5 : vector<8x8xi32>
    %8 = arith.extui %7 : vector<8x8xi1> to vector<8x8xi32>
    %9 = arith.sitofp %8 : vector<8x8xi32> to vector<8x8xf32>
    %cst = arith.constant -1.000000e+30 : f32
    %10 = vector.broadcast %cst : f32 to vector<1x1xf32>
    %cst_0 = arith.constant 0.000000e+00 : f32
    %11 = vector.broadcast %cst_0 : f32 to vector<1x1xf32>
    %cst_1 = arith.constant 0.000000e+00 : f32
    %12 = vector.broadcast %cst_1 : f32 to vector<1x1xf32>
    %c0_i32 = arith.constant 0 : i32
    %c8_i32 = arith.constant 8 : i32
    %13 = arith.muli %c0_i32, %c8_i32 : i32
    %14 = tpu.assume_multiple %13, 8 : i32
    %15 = arith.index_cast %14 : i32 to index
    %c0 = arith.constant 0 : index
    %16 = vector.load %arg1[%15, %c0] : memref<8x128xf32, #tpu.memory_space<vmem>>, vector<8x128xf32>
    %17 = arith.index_cast %14 : i32 to index
    %c0_2 = arith.constant 0 : index
    %18 = vector.load %arg2[%17, %c0_2] : memref<8x128xf32, #tpu.memory_space<vmem>>, vector<8x128xf32>
    %cst_3 = arith.constant dense<0xFF800000> : vector<8xf32>
    %19 = vector.multi_reduction <maximumf>, %16, %cst_3 [1] : vector<8x128xf32> to vector<8xf32>
    %20 = vector.shape_cast %19 : vector<8xf32> to vector<8x1xf32>
    %cst_4 = arith.constant dense<0xFF800000> : vector<1xf32>
    %21 = vector.multi_reduction <maximumf>, %20, %cst_4 [0] : vector<8x1xf32> to vector<1xf32>
    %22 = vector.shape_cast %21 : vector<1xf32> to vector<1x1xf32>
    %23 = arith.maximumf %10, %22 : vector<1x1xf32>
    %24 = arith.subf %10, %23 : vector<1x1xf32>
    %25 = math.exp %24 : vector<1x1xf32>
    %26 = arith.mulf %11, %25 : vector<1x1xf32>
    %27 = vector.broadcast %23 : vector<1x1xf32> to vector<8x128xf32>
    %28 = arith.subf %16, %27 : vector<8x128xf32>
    %29 = math.exp %28 : vector<8x128xf32>
    %cst_5 = arith.constant dense<0.000000e+00> : vector<8x128xf32>
    %30 = tpu.matmul %29, %4, %cst_5 {dimension_numbers = #tpu.dot_dimension_numbers<[1], [0], [0], [1], [0, 0, 1, 1], [], []>} : vector<8x128xf32>, vector<128x128xf32>, vector<8x128xf32> -> vector<8x128xf32>
    %cst_6 = arith.constant dense<0.000000e+00> : vector<8x128xf32>
    %31 = tpu.matmul %9, %29, %cst_6 {dimension_numbers = #tpu.dot_dimension_numbers<[1], [0], [0], [1], [0, 0, 1, 1], [], []>} : vector<8x8xf32>, vector<8x128xf32>, vector<8x128xf32> -> vector<8x128xf32>
    %cst_7 = arith.constant dense<0.000000e+00> : vector<8xf32>
    %32 = vector.multi_reduction <add>, %31, %cst_7 [1] : vector<8x128xf32> to vector<8xf32>
    %33 = vector.shape_cast %32 : vector<8xf32> to vector<8x1xf32>
    %34 = vector.broadcast %33 : vector<8x1xf32> to vector<8x128xf32>
    %35 = arith.addf %30, %34 : vector<8x128xf32>
    %36 = vector.broadcast %26 : vector<1x1xf32> to vector<8x128xf32>
    %37 = arith.addf %35, %36 : vector<8x128xf32>
    %38 = math.log %37 : vector<8x128xf32>
    %39 = vector.broadcast %23 : vector<1x1xf32> to vector<8x128xf32>
    %40 = arith.addf %39, %38 : vector<8x128xf32>
    %41 = arith.subf %40, %16 : vector<8x128xf32>
    %42 = arith.mulf %18, %41 : vector<8x128xf32>
    %cst_8 = arith.constant dense<0.000000e+00> : vector<8xf32>
    %43 = vector.multi_reduction <add>, %42, %cst_8 [1] : vector<8x128xf32> to vector<8xf32>
    %44 = vector.shape_cast %43 : vector<8xf32> to vector<8x1xf32>
    %cst_9 = arith.constant dense<0.000000e+00> : vector<1xf32>
    %45 = vector.multi_reduction <add>, %44, %cst_9 [0] : vector<8x1xf32> to vector<1xf32>
    %46 = vector.shape_cast %45 : vector<1xf32> to vector<1x1xf32>
    %cst_10 = arith.constant dense<0.000000e+00> : vector<8xf32>
    %47 = vector.multi_reduction <add>, %29, %cst_10 [1] : vector<8x128xf32> to vector<8xf32>
    %48 = vector.shape_cast %47 : vector<8xf32> to vector<8x1xf32>
    %cst_11 = arith.constant dense<0.000000e+00> : vector<1xf32>
    %49 = vector.multi_reduction <add>, %48, %cst_11 [0] : vector<8x1xf32> to vector<1xf32>
    %50 = vector.shape_cast %49 : vector<1xf32> to vector<1x1xf32>
    %51 = arith.addf %26, %50 : vector<1x1xf32>
    %52 = arith.addf %12, %46 : vector<1x1xf32>
    %c1_i32 = arith.constant 1 : i32
    %cst_12 = arith.constant 1.250000e-01 : f32
    %53 = vector.broadcast %cst_12 : f32 to vector<1x1xf32>
    %54 = arith.mulf %52, %53 : vector<1x1xf32>
    %c0_13 = arith.constant 0 : index
    %c0_14 = arith.constant 0 : index
    %55 = vector.load %arg3[%c0_13, %c0_14] : memref<1x1xf32, #tpu.memory_space<vmem>>, vector<1x1xf32>
    tpu.vector_store %arg3[%c0_13, %c0_14], %54 {strides = array<i32>} : memref<1x1xf32, #tpu.memory_space<vmem>>, vector<1x1xf32>,
    return
  }
  func.func @transform_0(%arg0: i32) -> (i32, i32) {
    %c0_i32 = arith.constant 0 : i32
    %c0_i32_0 = arith.constant 0 : i32
    %c0_i32_1 = arith.constant 0 : i32
    return %c0_i32, %c0_i32_0 : i32, i32
  }
  func.func @transform_1(%arg0: i32) -> (i32, i32) {
    %c0_i32 = arith.constant 0 : i32
    %c0_i32_0 = arith.constant 0 : i32
    %c0_i32_1 = arith.constant 0 : i32
    return %c0_i32, %c0_i32_0 : i32, i32
  }
  func.func @transform_2(%arg0: i32) -> (i32, i32) {
    %c0_i32 = arith.constant 0 : i32
    %c0_i32_0 = arith.constant 0 : i32
    %c0_i32_1 = arith.constant 0 : i32
    return %c0_i32, %c0_i32_0 : i32, i32
  }
}

</mosaic_0001>

<llo_original>
// kernel: tpu_custom_call.1
$region0: #{tpu_custom_call.1}
  #allocation0 [shape = 'u32[]', space=smem, size = 0x4, offset = 0x4, fixed_abs, tag = 'smem constant byte address 0x4 - core index']
  #allocation1 [shape = 'u32[144,128]{1,0:T(1,128)}', space=vmem, size = 0x12000, scoped, tag = 'internal scratch']
  %s0 = inlined_call_operand.hbm [shape: f32[8,128], index: 0, kind: input, shape index: {}]
  %s1 = inlined_call_operand.hbm [shape: f32[8,128], index: 1, kind: input, shape index: {}]
  %s2 = inlined_call_operand.hbm [shape: f32[1,1], index: 2, kind: output, shape index: {}]
  %s3 = sld [smem:[#allocation0]]
  $region26: #{tpu_custom_call.1} parent=0
    _
  %s5 = ssub.s32 1, %s3
  %s6 = scalar_select 0, %s5, %s3
  $region1: #{tpu_custom_call.1} parent=0
    #allocation2 [shape = 'u8[4096]{0}', space=vmem, size = 0x1000, scoped, tag = 'input window, operand 0, single buffered']
    #allocation3 [shape = 's32[1]{0}', space=sflag, size = 0x4, scoped, tag = 'scoped memory for tpu_custom_call.1']
    #allocation4 [shape = 's32[1]{0}', space=sflag, size = 0x4, scoped, tag = 'scoped memory for tpu_custom_call.1']
    #allocation5 [shape = 'u8[4096]{0}', space=vmem, size = 0x1000, scoped, tag = 'input window, operand 1, single buffered']
    #allocation6 [shape = 's32[1]{0}', space=sflag, size = 0x4, scoped, tag = 'scoped memory for tpu_custom_call.1']
    #allocation7 [shape = 'u8[512]{0}', space=vmem, size = 0x400, scoped, tag = 'output window, operand 0, single buffered']
    %7 = vsyncpa [#allocation3], 0
    %8 = vsyncpa [#allocation6], 0
    %9 = vsyncpa [#allocation4], 0
    // Predicated region
    $region2: #{tpu_custom_call.1} parent=1 // pred_check
      _
    $region3: #{tpu_custom_call.1} parent=1 // pred_check_branch
      %11 = sbr.rel (0) target = $region5
    $region4: #{tpu_custom_call.1} parent=1 // pred_region
      %s13 = ssub.s32 128, 128
      %14 = vsyncadd [#allocation3], %s13
      %s16 = sshll.u32 [#allocation2], 4
      %s17 = int_to_ptr.vmem [resolvable:$true] %s16
      %19 = dma.hbm_to_vmem [thread:$0]  %s0, 128, %s17, [#allocation3]
    $region5: #{tpu_custom_call.1} parent=1 // pred_fallthru
      _
    // Predicated region
    $region6: #{tpu_custom_call.1} parent=1 // pred_check
      _
    $region7: #{tpu_custom_call.1} parent=1 // pred_check_branch
      %21 = sbr.rel (0) target = $region9
    $region8: #{tpu_custom_call.1} parent=1 // pred_region
      %s23 = ssub.s32 128, 128
      %24 = vsyncadd [#allocation6], %s23
      %s26 = sshll.u32 [#allocation5], 4
      %s27 = int_to_ptr.vmem [resolvable:$true] %s26
      %29 = dma.hbm_to_vmem [thread:$0]  %s1, 128, %s27, [#allocation6]
    $region9: #{tpu_custom_call.1} parent=1 // pred_fallthru
      _
    // Predicated region
    $region10: #{tpu_custom_call.1} parent=1 // pred_check
      _
    $region11: #{tpu_custom_call.1} parent=1 // pred_check_branch
      %31 = sbr.rel (0) target = $region13
    $region12: #{tpu_custom_call.1} parent=1 // pred_region
      %32 = dma.done [#allocation3], 128
    $region13: #{tpu_custom_call.1} parent=1 // pred_fallthru
      _
    // Predicated region
    $region14: #{tpu_custom_call.1} parent=1 // pred_check
      _
    $region15: #{tpu_custom_call.1} parent=1 // pred_check_branch
      %34 = sbr.rel (0) target = $region17
    $region16: #{tpu_custom_call.1} parent=1 // pred_region
      %35 = dma.done [#allocation6], 128
    $region17: #{tpu_custom_call.1} parent=1 // pred_fallthru
      _
    %v36 = vlaneseq
    %v37 = vshrl.u32 %v36, 7
    %v38 = vadd.s32 %v37, 8
    %v39 = vadd.s32 %v37, 16
    %v40 = vadd.s32 %v37, 24
    %v41 = vadd.s32 %v37, 32
    %v42 = vadd.s32 %v37, 40
    %v43 = vadd.s32 %v37, 48
    %v44 = vadd.s32 %v37, 56
    %v45 = vadd.s32 %v37, 64
    %v46 = vadd.s32 %v37, 72
    %v47 = vadd.s32 %v37, 80
    %v48 = vadd.s32 %v37, 88
    %v49 = vadd.s32 %v37, 96
    %v50 = vadd.s32 %v37, 104
    %v51 = vadd.s32 %v37, 112
    %v52 = vadd.s32 %v37, 120
    %v53 = vlaneseq
    %v54 = vand.u32 %v53, 127
    %vm55 = vcmp.le.s32.totalorder %v37, %v54
    %vm56 = vcmp.le.s32.totalorder %v38, %v54
    %vm57 = vcmp.le.s32.totalorder %v39, %v54
    %vm58 = vcmp.le.s32.totalorder %v40, %v54
    %vm59 = vcmp.le.s32.totalorder %v41, %v54
    %vm60 = vcmp.le.s32.totalorder %v42, %v54
    %vm61 = vcmp.le.s32.totalorder %v43, %v54
    %vm62 = vcmp.le.s32.totalorder %v44, %v54
    %vm63 = vcmp.le.s32.totalorder %v45, %v54
    %vm64 = vcmp.le.s32.totalorder %v46, %v54
    %vm65 = vcmp.le.s32.totalorder %v47, %v54
    %vm66 = vcmp.le.s32.totalorder %v48, %v54
    %vm67 = vcmp.le.s32.totalorder %v49, %v54
    %vm68 = vcmp.le.s32.totalorder %v50, %v54
    %vm69 = vcmp.le.s32.totalorder %v51, %v54
    %vm70 = vcmp.le.s32.totalorder %v52, %v54
    %v71 = vsel %vm55, 1, 0
    %v72 = vsel %vm56, 1, 0
    %v73 = vsel %vm57, 1, 0
    %v74 = vsel %vm58, 1, 0
    %v75 = vsel %vm59, 1, 0
    %v76 = vsel %vm60, 1, 0
    %v77 = vsel %vm61, 1, 0
    %v78 = vsel %vm62, 1, 0
    %v79 = vsel %vm63, 1, 0
    %v80 = vsel %vm64, 1, 0
    %v81 = vsel %vm65, 1, 0
    %v82 = vsel %vm66, 1, 0
    %v83 = vsel %vm67, 1, 0
    %v84 = vsel %vm68, 1, 0
    %v85 = vsel %vm69, 1, 0
    %v86 = vsel %vm70, 1, 0
    %v87 = vcvt.s32.f32 %v71
    %v88 = vcvt.s32.f32 %v72
    %v89 = vcvt.s32.f32 %v73
    %v90 = vcvt.s32.f32 %v74
    %v91 = vcvt.s32.f32 %v75
    %v92 = vcvt.s32.f32 %v76
    %v93 = vcvt.s32.f32 %v77
    %v94 = vcvt.s32.f32 %v78
    %v95 = vcvt.s32.f32 %v79
    %v96 = vcvt.s32.f32 %v80
    %v97 = vcvt.s32.f32 %v81
    %v98 = vcvt.s32.f32 %v82
    %v99 = vcvt.s32.f32 %v83
    %v100 = vcvt.s32.f32 %v84
    %v101 = vcvt.s32.f32 %v85
    %v102 = vcvt.s32.f32 %v86
    %vm103 = vcmp.lt.s32.totalorder %v54, %v37
    %v104 = vsel %vm103, 1, 0
    %v105 = vcvt.s32.f32 %v104
    %v106 = vld [vmem:[#allocation2] sm:$0xff]
    %v107 = vld [vmem:[#allocation5] sm:$0xff]
    %108 = vmax.xlane.f32.xlu0 %v106
    %v109 = vpop.xlane.xlu0 %108
    %v110 = vrot.slane %v109, 4
    %v111 = vmax.f32 %v109, %v110
    %v112 = vrot.slane %v111, 2
    %v113 = vmax.f32 %v111, %v112
    %v114 = vrot.slane %v113, 1
    %v115 = vmax.f32 %v113, %v114
    %v116 = vmax.f32 %v115, -1e+30
    %v117 = vsub.f32 -1e+30, %v116
    %v118 = vmul.f32 %v117, 1.442695
    %v119 = vpow.pop %v118
    %v120 = vmul.f32 %v119, 0.0
    %v121 = vsub.f32 %v106, %v116
    %v122 = vmul.f32 %v121, 1.442695
    %v123 = vpow.pop %v122
    %vm124 = vcmask 64512
    %v126 = vsel %vm124, %v105, 0
    %128 = vmatprep.subr.mxu0 0.0
    %129 = vmatpush1.msra.mxu0 %v123
    %130 = vmatprep.subr.mxu0 0.0
    %131 = vmatpush1.msra.mxu0 0.0
    %132 = vmatprep.subr.mxu0 0.0
    %133 = vmatpush1.msra.mxu0 0.0
    %134 = vmatprep.subr.mxu0 0.0
    %135 = vmatpush1.msra.mxu0 0.0
    %136 = vmatprep.subr.mxu0 0.0
    %137 = vmatpush1.msra.mxu0 0.0
    %138 = vmatprep.subr.mxu0 0.0
    %139 = vmatpush1.msra.mxu0 0.0
    %140 = vmatprep.subr.mxu0 0.0
    %141 = vmatpush1.msra.mxu0 0.0
    %142 = vmatprep.subr.mxu0 0.0
    %143 = vmatpush1.msra.mxu0 0.0
    %144 = vmatprep.subr.mxu0 0.0
    %145 = vmatpush1.msra.mxu0 0.0
    %146 = vmatprep.subr.mxu0 0.0
    %147 = vmatpush1.msra.mxu0 0.0
    %148 = vmatprep.subr.mxu0 0.0
    %149 = vmatpush1.msra.mxu0 0.0
    %150 = vmatprep.subr.mxu0 0.0
    %151 = vmatpush1.msra.mxu0 0.0
    %152 = vmatprep.subr.mxu0 0.0
    %153 = vmatpush1.msra.mxu0 0.0
    %154 = vmatprep.subr.mxu0 0.0
    %155 = vmatpush1.msra.mxu0 0.0
    %156 = vmatprep.subr.mxu0 0.0
    %157 = vmatpush1.msra.mxu0 0.0
    %158 = vmatprep.subr.mxu0 0.0
    %159 = vmatpush1.msra.mxu0 0.0
    %160 = vmatprep.subr.mxu0 0.0
    %161 = vmatpush1.msra.mxu0 0.0
    %162 = vmatprep.subr.mxu0 0.0
    %163 = vmatpush1.msra.mxu0 0.0
    %164 = vmatprep.subr.mxu0 0.0
    %165 = vmatpush1.msra.mxu0 0.0
    %166 = vmatprep.subr.mxu0 0.0
    %167 = vmatpush1.msra.mxu0 0.0
    %168 = vmatprep.subr.mxu0 0.0
    %169 = vmatpush1.msra.mxu0 0.0
    %170 = vmatprep.subr.mxu0 0.0
    %171 = vmatpush1.msra.mxu0 0.0
    %172 = vmatprep.subr.mxu0 0.0
    %173 = vmatpush1.msra.mxu0 0.0
    %174 = vmatprep.subr.mxu0 0.0
    %175 = vmatpush1.msra.mxu0 0.0
    %176 = vmatprep.subr.mxu0 0.0
    %177 = vmatpush1.msra.mxu0 0.0
    %178 = vmatprep.subr.mxu0 0.0
    %179 = vmatpush1.msra.mxu0 0.0
    %180 = vmatprep.subr.mxu0 0.0
    %181 = vmatpush1.msra.mxu0 0.0
    %182 = vmatprep.subr.mxu0 0.0
    %183 = vmatpush1.msra.mxu0 0.0
    %184 = vmatprep.subr.mxu0 0.0
    %185 = vmatpush1.msra.mxu0 0.0
    %186 = vmatprep.subr.mxu0 0.0
    %187 = vmatpush1.msra.mxu0 0.0
    %188 = vmatprep.subr.mxu0 0.0
    %189 = vmatpush1.msra.mxu0 0.0
    %190 = vmatprep.subr.mxu0 0.0
    %191 = vmatpush1.msra.mxu0 0.0
    %192 = vmatprep.mubr.f32.mxu0 0.0
    %193 = vmatmul.mubr.f32.gmra.mrb[0].mxu0 %v126
    %v194 = vpop.f32.mrb[0].mxu0
    %v195 = vadd.f32 0.0, %v194
    %v196 = vpop.f32.mrb[0].mxu0
    %197 = vdwg.mxu0
    %198 = vadd.xlane.f32.xlu0 %v195
    %v199 = vpop.xlane.xlu0 %198
    %200 = vmatprep.subr.mxu0 0.0
    %201 = vmatpush1.msra.mxu0 %v87
    %202 = vmatprep.subr.mxu0 0.0
    %203 = vmatpush1.msra.mxu0 %v88
    %204 = vmatprep.subr.mxu0 0.0
    %205 = vmatpush1.msra.mxu0 %v89
    %206 = vmatprep.subr.mxu0 0.0
    %207 = vmatpush1.msra.mxu0 %v90
    %208 = vmatprep.subr.mxu0 0.0
    %209 = vmatpush1.msra.mxu0 %v91
    %210 = vmatprep.subr.mxu0 0.0
    %211 = vmatpush1.msra.mxu0 %v92
    %212 = vmatprep.subr.mxu0 0.0
    %213 = vmatpush1.msra.mxu0 %v93
    %214 = vmatprep.subr.mxu0 0.0
    %215 = vmatpush1.msra.mxu0 %v94
    %216 = vmatprep.subr.mxu0 0.0
    %217 = vmatpush1.msra.mxu0 %v95
    %218 = vmatprep.subr.mxu0 0.0
    %219 = vmatpush1.msra.mxu0 %v96
    %220 = vmatprep.subr.mxu0 0.0
    %221 = vmatpush1.msra.mxu0 %v97
    %222 = vmatprep.subr.mxu0 0.0
    %223 = vmatpush1.msra.mxu0 %v98
    %224 = vmatprep.subr.mxu0 0.0
    %225 = vmatpush1.msra.mxu0 %v99
    %226 = vmatprep.subr.mxu0 0.0
    %227 = vmatpush1.msra.mxu0 %v100
    %228 = vmatprep.subr.mxu0 0.0
    %229 = vmatpush1.msra.mxu0 %v101
    %230 = vmatprep.subr.mxu0 0.0
    %231 = vmatpush1.msra.mxu0 %v102
    %232 = vmatprep.subr.mxu0 0.0
    %233 = vmatpush1.msra.mxu0 0.0
    %234 = vmatprep.subr.mxu0 0.0
    %235 = vmatpush1.msra.mxu0 0.0
    %236 = vmatprep.subr.mxu0 0.0
    %237 = vmatpush1.msra.mxu0 0.0
    %238 = vmatprep.subr.mxu0 0.0
    %239 = vmatpush1.msra.mxu0 0.0
    %240 = vmatprep.subr.mxu0 0.0
    %241 = vmatpush1.msra.mxu0 0.0
    %242 = vmatprep.subr.mxu0 0.0
    %243 = vmatpush1.msra.mxu0 0.0
    %244 = vmatprep.subr.mxu0 0.0
    %245 = vmatpush1.msra.mxu0 0.0
    %246 = vmatprep.subr.mxu0 0.0
    %247 = vmatpush1.msra.mxu0 0.0
    %248 = vmatprep.subr.mxu0 0.0
    %249 = vmatpush1.msra.mxu0 0.0
    %250 = vmatprep.subr.mxu0 0.0
    %251 = vmatpush1.msra.mxu0 0.0
    %252 = vmatprep.subr.mxu0 0.0
    %253 = vmatpush1.msra.mxu0 0.0
    %254 = vmatprep.subr.mxu0 0.0
    %255 = vmatpush1.msra.mxu0 0.0
    %256 = vmatprep.subr.mxu0 0.0
    %257 = vmatpush1.msra.mxu0 0.0
    %258 = vmatprep.subr.mxu0 0.0
    %259 = vmatpush1.msra.mxu0 0.0
    %260 = vmatprep.subr.mxu0 0.0
    %261 = vmatpush1.msra.mxu0 0.0
    %262 = vmatprep.subr.mxu0 0.0
    %263 = vmatpush1.msra.mxu0 0.0
    %264 = vmatprep.mubr.f32.mxu0 0.0
    %265 = vmatmul.mubr.f32.gmra.mrb[0].mxu0 %v123
    %v266 = vpop.f32.mrb[0].mxu0
    %v267 = vadd.f32 %v199, %v266
    %v268 = vpop.f32.mrb[0].mxu0
    %269 = vdwg.mxu0
    %v270 = vadd.f32 %v267, %v120
    %v271 = vlog2.pop %v270
    %v272 = vmul.f32 %v271, 0.6931472
    %v273 = vadd.f32 %v116, %v272
    %v274 = vsub.f32 %v273, %v106
    %v275 = vmul.f32 %v107, %v274
    %276 = vadd.xlane.f32.xlu0 %v275
    %v277 = vpop.xlane.xlu0 %276
    %v278 = vrot.slane %v277, 4
    %v279 = vadd.f32 %v277, %v278
    %v280 = vrot.slane %v279, 2
    %v281 = vadd.f32 %v279, %v280
    %v282 = vrot.slane %v281, 1
    %v283 = vadd.f32 %v281, %v282
    %v284 = vadd.f32 %v283, 0.0
    %v285 = vmul.f32 %v284, 0.125
    %vm286 = vcmask 0
    %287 = vst.msk [vmem:[#allocation7] sm:$0x1] %vm286, %v285
    // Predicated region
    $region18: #{tpu_custom_call.1} parent=1 // pred_check
      _
    $region19: #{tpu_custom_call.1} parent=1 // pred_check_branch
      %289 = sbr.rel (0) target = $region21
    $region20: #{tpu_custom_call.1} parent=1 // pred_region
      %s291 = ssub.s32 16, 16
      %292 = vsyncadd [#allocation4], %s291
      %s294 = sshll.u32 [#allocation7], 4
      %s295 = int_to_ptr.vmem [resolvable:$true] %s294
      %297 = dma.vmem_to_hbm [thread:$0]  %s295, 16, %s2, [#allocation4]
    $region21: #{tpu_custom_call.1} parent=1 // pred_fallthru
      _
    // Predicated region
    $region22: #{tpu_custom_call.1} parent=1 // pred_check
      _
    $region23: #{tpu_custom_call.1} parent=1 // pred_check_branch
      %299 = sbr.rel (0) target = $region25
    $region24: #{tpu_custom_call.1} parent=1 // pred_region
      %300 = dma.done [#allocation4], 16
    $region25: #{tpu_custom_call.1} parent=1 // pred_fallthru
      _
    %301 = vsyncpa [#allocation3], 1
    %302 = vsyncpa [#allocation6], 1
    %303 = vsyncpa [#allocation4], 1

</llo_original>
